<compile_context>
chip_gen: v5e
topology: v5e:2x2
jax: 0.10.0
libtpu: 0.0.40
codegen_flags: <defaults>
</compile_context>

<pallas_src>
import numpy as np
import jax
import jax.numpy as jnp
from jax import lax
from jax.experimental import pallas as pl
from jax.experimental.pallas import tpu as pltpu

_LANES = 128          # batch lanes per block (TPU lane width)
_NEG = -1.0e30        # effectively -inf in log space (exact under f32 exp)


def _logaddexp(x, y):
    """logaddexp that returns -inf (not NaN) when both arguments are -inf."""
    m = jnp.maximum(x, y)
    out = m + jnp.log1p(jnp.exp(-jnp.abs(x - y)))
    return jnp.where(m == -jnp.inf, m, out)


def _rnnt_kernel(blank_ref, emit_ref, tlast_ref, ulast_ref, loss_ref, beta_ref):
    """One (T-tile, N-block) step of the RNN-T forward recursion.

    blank_ref : (Tt, U,   Nb) f32  log P(blank | t, u)  for this T tile
    emit_ref  : (Tt, U-1, Nb) f32  log P(y_{u+1}| t, u)  for this T tile
    tlast_ref : (1, Nb) i32  input_lengths - 1  (-1 on padded lanes)
    ulast_ref : (1, Nb) i32  target_lengths
    loss_ref  : (1, Nb) f32  output accumulator (resident across the T grid axis)
    beta_ref  : (U, Nb) f32  carried row  beta[t-1, u] = alpha[t-1, u] + blank[t-1, u]
    """
    Tt, U, Nb = blank_ref.shape
    tb = pl.program_id(1)                       # sequential T-tile index

    u_iota = lax.broadcasted_iota(jnp.int32, (U, Nb), 0)   # hoisted out of loops
    tl = tlast_ref[...]                         # (1, Nb)
    ul = ulast_ref[...]                         # (1, Nb)

    @pl.when(tb == 0)
    def _init():
        loss_ref[...] = jnp.zeros_like(loss_ref)
        # "virtual row t = -1": beta[-1, 0] = 0, beta[-1, u>0] = -inf makes the
        # generic recursion below also produce the correct t == 0 row.
        beta_ref[...] = jnp.where(u_iota == 0, 0.0, _NEG)

    def row_body(lt, carry):
        t = tb * Tt + lt                        # global frame index of this row

        # One bulk load per row (dynamic index only on the leading tile axis).
        emit_row = emit_ref[lt]                 # (U-1, Nb)

        # alpha[t, 0] = beta[t-1, 0]; it already sits in beta_ref[0].
        a = beta_ref[0:1, :]
        # alpha[t, u] = logaddexp(beta[t-1, u], alpha[t, u-1] + emit[t, u-1]).
        # Overwrite beta_ref[u] with alpha[t, u] as we go: beta[t-1, u] is read
        # before it is clobbered, so the update is safely in-place and register
        # pressure stays O(1) in U (no list + concatenate).
        for u in range(1, U):
            a = _logaddexp(beta_ref[u:u + 1, :], a + emit_row[u - 1:u, :])
            beta_ref[u:u + 1, :] = a

        # One full-width VPU op turns the alpha row into beta[t,:] = alpha + blank[t].
        beta_ref[...] = beta_ref[...] + blank_ref[lt]

        # loss_n = -beta[tlast_n, ulast_n]: accumulate the instant row tlast is done.
        hit = (u_iota == ul) & (t == tl)
        loss_ref[...] = loss_ref[...] - jnp.sum(
            jnp.where(hit, beta_ref[...], 0.0), axis=0, keepdims=True)
        return carry

    lax.fori_loop(0, Tt, row_body, 0)


def _pick_block_t(T, U, n_lanes, budget_bytes=8 << 20):
    """Largest T-tile whose double-buffered blank+emit tiles fit the VMEM budget."""
    cols = U + max(U - 1, 1)
    bytes_per_row = 2 * cols * n_lanes * 4          # x2 for double buffering
    bt = max(1, budget_bytes // bytes_per_row)
    return int(min(bt, T, 1024))


def rnnt_loss_pallas(log_probs, targets, input_lengths, target_lengths,
                     blank=0, reduction="mean", block_t=None):
    """Pallas-backed equivalent of warp_rnnt.rnnt_loss (gather formulation)."""
    N, T, U, V = log_probs.shape
    log_probs = log_probs.astype(jnp.float32)
    targets = targets.astype(jnp.int32)

    # --- gather (memory-saving, as warp_rnnt gather=True; same result) ---
    blank_lp = log_probs[..., blank]                                   # (N, T, U)
    if U > 1:
        idx = jnp.broadcast_to(targets[:, None, :, None], (N, T, U - 1, 1))
        emit_lp = jnp.take_along_axis(log_probs[:, :, :U - 1, :], idx, axis=3)[..., 0]
    else:
        emit_lp = jnp.zeros((N, T, 1), jnp.float32)                    # degenerate U==1
    U_e = emit_lp.shape[2]

    # --- layout (T, U, N): batch on lanes; pad N to 128 lanes, T to full tiles ---
    blank_tun = jnp.transpose(blank_lp, (1, 2, 0))                     # (T, U,   N)
    emit_tun = jnp.transpose(emit_lp, (1, 2, 0))                       # (T, U_e, N)

    nb = _LANES
    n_pad = ((N + nb - 1) // nb) * nb
    bt = block_t if block_t is not None else _pick_block_t(T, U, nb)
    t_pad = ((T + bt - 1) // bt) * bt

    blank_tun = jnp.pad(blank_tun, ((0, t_pad - T), (0, 0), (0, n_pad - N)))
    emit_tun = jnp.pad(emit_tun, ((0, t_pad - T), (0, 0), (0, n_pad - N)))

    # tlast = -1 on padded lanes (and for zero-length inputs) -> their loss stays 0.
    t_last = jnp.full((1, n_pad), -1, jnp.int32)
    t_last = t_last.at[0, :N].set(input_lengths.astype(jnp.int32) - 1)
    u_last = jnp.zeros((1, n_pad), jnp.int32)
    u_last = u_last.at[0, :N].set(target_lengths.astype(jnp.int32))

    grid = (n_pad // nb, t_pad // bt)      # (batch blocks: parallel, T tiles: sequential)

    tile_bytes = 2 * (bt * U * nb * 4 + bt * U_e * nb * 4)   # double-buffered inputs
    vmem_limit = int(min(max(2 * tile_bytes + (4 << 20), 16 << 20), 64 << 20))

    losses = pl.pallas_call(
        _rnnt_kernel,
        out_shape=jax.ShapeDtypeStruct((1, n_pad), jnp.float32),
        grid=grid,
        in_specs=[
            pl.BlockSpec((bt, U, nb), lambda n, t: (t, 0, n)),
            pl.BlockSpec((bt, U_e, nb), lambda n, t: (t, 0, n)),
            pl.BlockSpec((1, nb), lambda n, t: (0, n)),
            pl.BlockSpec((1, nb), lambda n, t: (0, n)),
        ],
        out_specs=pl.BlockSpec((1, nb), lambda n, t: (0, n)),
        scratch_shapes=[pltpu.VMEM((U, nb), jnp.float32)],
        compiler_params=pltpu.CompilerParams(
            dimension_semantics=("parallel", "arbitrary"),
            vmem_limit_bytes=vmem_limit),
    )(blank_tun, emit_tun, t_last, u_last)

    losses = losses[0, :N]
    if reduction == "mean":
        return jnp.mean(losses)
    if reduction == "sum":
        return jnp.sum(losses)
    return losses


class TransducerLoss:
    """Mirror of openspeech TransducerLoss (no learned parameters)."""

    def __init__(self, blank_id=0, reduction="mean", gather=True):
        self.blank_id = blank_id
        self.reduction = reduction
        self.gather = gather  # kernel always uses the gather formulation (same result)

    def __call__(self, logits, targets, input_lengths, target_lengths):
        return rnnt_loss_pallas(logits, targets, input_lengths, target_lengths,
                                blank=self.blank_id, reduction=self.reduction)


def _rnnt_reference(log_probs, targets, input_lengths, target_lengths, blank):
    """Pure numpy reference of the RNN-T forward recursion."""
    N = log_probs.shape[0]
    losses = []
    for n in range(N):
        Tn = int(input_lengths[n])
        Un = int(target_lengths[n]) + 1
        lp = log_probs[n]
        alpha = np.zeros((Tn, Un), dtype=np.float64)
        for t in range(1, Tn):
            alpha[t, 0] = alpha[t - 1, 0] + lp[t - 1, 0, blank]
        for u in range(1, Un):
            alpha[0, u] = alpha[0, u - 1] + lp[0, u - 1, targets[n, u - 1]]
        for t in range(1, Tn):
            for u in range(1, Un):
                no_emit = alpha[t - 1, u] + lp[t - 1, u, blank]
                do_emit = alpha[t, u - 1] + lp[t, u - 1, targets[n, u - 1]]
                alpha[t, u] = np.logaddexp(no_emit, do_emit)
        losses.append(-(alpha[Tn - 1, Un - 1] + lp[Tn - 1, Un - 1, blank]))
    return np.asarray(losses)


if __name__ == "__main__":
    key = jax.random.PRNGKey(0)
    N, T, U, V = 2, 8, 5, 11          # batch, frames, labels+1, vocab (incl. blank)
    blank_id = 0

    k1, k2 = jax.random.split(key)
    raw = jax.random.normal(k1, (N, T, U, V), dtype=jnp.float32)
    log_probs = jax.nn.log_softmax(raw, axis=-1)     # warp_rnnt expects log-softmax input
    targets = jax.random.randint(k2, (N, U - 1), 1, V, dtype=jnp.int32)
    input_lengths = jnp.array([T, T - 2], dtype=jnp.int32)
    target_lengths = jnp.array([U - 1, U - 3], dtype=jnp.int32)

    # per-sample losses from the kernel
    per_sample = rnnt_loss_pallas(log_probs, targets, input_lengths, target_lengths,
                                  blank=blank_id, reduction="none")
    per_sample = jax.block_until_ready(per_sample)

    # module-style mean reduction
    criterion = TransducerLoss(blank_id=blank_id, reduction="mean", gather=True)
    loss = jax.block_until_ready(
        criterion(log_probs, targets, input_lengths, target_lengths))

    ref = _rnnt_reference(np.asarray(log_probs), np.asarray(targets),
                          np.asarray(input_lengths), np.asarray(target_lengths),
                          blank_id)
    np.testing.assert_allclose(np.asarray(per_sample), ref, rtol=1e-4, atol=1e-4)
    np.testing.assert_allclose(float(loss), float(ref.mean()), rtol=1e-4, atol=1e-4)
    print("KERNEL_OK")
</pallas_src>

<mosaic_0001>
module attributes {stable_mosaic.version = 11 : i64} {
  func.func @_rnnt_kernel(%arg0: i32, %arg1: i32, %arg2: memref<8x5x128xf32, #tpu.memory_space<vmem>>, %arg3: memref<8x4x128xf32, #tpu.memory_space<vmem>>, %arg4: memref<1x128xi32, #tpu.memory_space<vmem>>, %arg5: memref<1x128xi32, #tpu.memory_space<vmem>>, %arg6: memref<1x128xf32, #tpu.memory_space<vmem>>, %arg7: memref<5x128xf32, #tpu.memory_space<vmem>>) attributes {dimension_semantics = [#tpu.dimension_semantics<parallel>, #tpu.dimension_semantics<arbitrary>], iteration_bounds = array<i64: 1, 1>, scalar_prefetch = 0 : i64, scratch_operands = 1 : i64, tpu.core_type = #tpu.core_type<tc>, window_params = [{transform_indices = @transform_0, window_bounds = array<i64: 8, 5, 128>}, {transform_indices = @transform_1, window_bounds = array<i64: 8, 4, 128>}, {transform_indices = @transform_2, window_bounds = array<i64: 1, 128>}, {transform_indices = @transform_3, window_bounds = array<i64: 1, 128>}, {transform_indices = @transform_4, window_bounds = array<i64: 1, 128>}]} {
    %0 = tpu.iota {dimensions = array<i32: 0>} : vector<5x128xi32>
    %c0 = arith.constant 0 : index
    %c0_0 = arith.constant 0 : index
    %1 = vector.load %arg4[%c0, %c0_0] : memref<1x128xi32, #tpu.memory_space<vmem>>, vector<1x128xi32>
    %c0_1 = arith.constant 0 : index
    %c0_2 = arith.constant 0 : index
    %2 = vector.load %arg5[%c0_1, %c0_2] : memref<1x128xi32, #tpu.memory_space<vmem>>, vector<1x128xi32>
    %c0_i32 = arith.constant 0 : i32
    %3 = arith.cmpi eq, %arg1, %c0_i32 : i32
    %4 = arith.extui %3 : i1 to i32
    %c0_i32_3 = arith.constant 0 : i32
    %5 = arith.cmpi ne, %4, %c0_i32_3 : i32
    scf.if %5 {
      %cst = arith.constant 0.000000e+00 : f32
      %7 = vector.broadcast %cst : f32 to vector<1x128xf32>
      %c0_6 = arith.constant 0 : index
      %c0_7 = arith.constant 0 : index
      %8 = vector.load %arg6[%c0_6, %c0_7] : memref<1x128xf32, #tpu.memory_space<vmem>>, vector<1x128xf32>
      tpu.vector_store %arg6[%c0_6, %c0_7], %7 {strides = array<i32>} : memref<1x128xf32, #tpu.memory_space<vmem>>, vector<1x128xf32>,
      %c0_i32_8 = arith.constant 0 : i32
      %9 = vector.broadcast %c0_i32_8 : i32 to vector<5x128xi32>
      %10 = arith.cmpi eq, %0, %9 : vector<5x128xi32>
      %cst_9 = arith.constant 0.000000e+00 : f32
      %cst_10 = arith.constant -1.000000e+30 : f32
      %11 = vector.broadcast %cst_9 : f32 to vector<5x128xf32>
      %12 = vector.broadcast %cst_10 : f32 to vector<5x128xf32>
      %13 = arith.select %10, %11, %12 : vector<5x128xi1>, vector<5x128xf32>
      %c0_11 = arith.constant 0 : index
      %c0_12 = arith.constant 0 : index
      %14 = vector.load %arg7[%c0_11, %c0_12] : memref<5x128xf32, #tpu.memory_space<vmem>>, vector<5x128xf32>
      tpu.vector_store %arg7[%c0_11, %c0_12], %13 {strides = array<i32>} : memref<5x128xf32, #tpu.memory_space<vmem>>, vector<5x128xf32>,
    } else {
    }
    %c0_i32_4 = arith.constant 0 : i32
    %c8_i32 = arith.constant 8 : i32
    %6 = arith.addi %c0_i32_4, %c8_i32 : i32
    %c1_i32 = arith.constant 1 : i32
    scf.for %arg8 = %c0_i32_4 to %6 step %c1_i32  : i32 {
      %c8_i32_6 = arith.constant 8 : i32
      %7 = arith.muli %arg1, %c8_i32_6 : i32
      %8 = arith.addi %7, %arg8 : i32
      %9 = arith.index_cast %arg8 : i32 to index
      %c0_7 = arith.constant 0 : index
      %c0_8 = arith.constant 0 : index
      %10 = vector.load %arg3[%9, %c0_7, %c0_8] : memref<8x4x128xf32, #tpu.memory_space<vmem>>, vector<1x4x128xf32>
      %11 = vector.shape_cast %10 : vector<1x4x128xf32> to vector<4x128xf32>
      %c0_9 = arith.constant 0 : index
      %c0_10 = arith.constant 0 : index
      %12 = vector.load %arg7[%c0_9, %c0_10] : memref<5x128xf32, #tpu.memory_space<vmem>>, vector<1x128xf32>
      %c1 = arith.constant 1 : index
      %c0_11 = arith.constant 0 : index
      %13 = vector.load %arg7[%c1, %c0_11] : memref<5x128xf32, #tpu.memory_space<vmem>>, vector<1x128xf32>
      %14 = vector.extract_strided_slice %11 {offsets = [0, 0], sizes = [1, 128], strides = [1, 1]} : vector<4x128xf32> to vector<1x128xf32>
      %15 = arith.addf %12, %14 : vector<1x128xf32>
      %16 = arith.maximumf %13, %15 : vector<1x128xf32>
      %17 = arith.subf %13, %15 : vector<1x128xf32>
      %18 = math.absf %17 : vector<1x128xf32>
      %cst = arith.constant 0.000000e+00 : f32
      %19 = vector.broadcast %cst : f32 to vector<1x128xf32>
      %20 = arith.subf %19, %18 : vector<1x128xf32>
      %21 = math.exp %20 : vector<1x128xf32>
      %22 = math.log1p %21 : vector<1x128xf32>
      %23 = arith.addf %16, %22 : vector<1x128xf32>
      %cst_12 = arith.constant 0xFF800000 : f32
      %24 = vector.broadcast %cst_12 : f32 to vector<1x128xf32>
      %25 = arith.cmpf oeq, %16, %24 : vector<1x128xf32>
      %26 = arith.select %25, %16, %23 : vector<1x128xi1>, vector<1x128xf32>
      %c1_13 = arith.constant 1 : index
      %c0_14 = arith.constant 0 : index
      %27 = vector.load %arg7[%c1_13, %c0_14] : memref<5x128xf32, #tpu.memory_space<vmem>>, vector<1x128xf32>
      tpu.vector_store %arg7[%c1_13, %c0_14], %26 {strides = array<i32>} : memref<5x128xf32, #tpu.memory_space<vmem>>, vector<1x128xf32>,
      %c2 = arith.constant 2 : index
      %c0_15 = arith.constant 0 : index
      %28 = vector.load %arg7[%c2, %c0_15] : memref<5x128xf32, #tpu.memory_space<vmem>>, vector<1x128xf32>
      %29 = vector.extract_strided_slice %11 {offsets = [1, 0], sizes = [1, 128], strides = [1, 1]} : vector<4x128xf32> to vector<1x128xf32>
      %30 = arith.addf %26, %29 : vector<1x128xf32>
      %31 = arith.maximumf %28, %30 : vector<1x128xf32>
      %32 = arith.subf %28, %30 : vector<1x128xf32>
      %33 = math.absf %32 : vector<1x128xf32>
      %cst_16 = arith.constant 0.000000e+00 : f32
      %34 = vector.broadcast %cst_16 : f32 to vector<1x128xf32>
      %35 = arith.subf %34, %33 : vector<1x128xf32>
      %36 = math.exp %35 : vector<1x128xf32>
      %37 = math.log1p %36 : vector<1x128xf32>
      %38 = arith.addf %31, %37 : vector<1x128xf32>
      %cst_17 = arith.constant 0xFF800000 : f32
      %39 = vector.broadcast %cst_17 : f32 to vector<1x128xf32>
      %40 = arith.cmpf oeq, %31, %39 : vector<1x128xf32>
      %41 = arith.select %40, %31, %38 : vector<1x128xi1>, vector<1x128xf32>
      %c2_18 = arith.constant 2 : index
      %c0_19 = arith.constant 0 : index
      %42 = vector.load %arg7[%c2_18, %c0_19] : memref<5x128xf32, #tpu.memory_space<vmem>>, vector<1x128xf32>
      tpu.vector_store %arg7[%c2_18, %c0_19], %41 {strides = array<i32>} : memref<5x128xf32, #tpu.memory_space<vmem>>, vector<1x128xf32>,
      %c3 = arith.constant 3 : index
      %c0_20 = arith.constant 0 : index
      %43 = vector.load %arg7[%c3, %c0_20] : memref<5x128xf32, #tpu.memory_space<vmem>>, vector<1x128xf32>
      %44 = vector.extract_strided_slice %11 {offsets = [2, 0], sizes = [1, 128], strides = [1, 1]} : vector<4x128xf32> to vector<1x128xf32>
      %45 = arith.addf %41, %44 : vector<1x128xf32>
      %46 = arith.maximumf %43, %45 : vector<1x128xf32>
      %47 = arith.subf %43, %45 : vector<1x128xf32>
      %48 = math.absf %47 : vector<1x128xf32>
      %cst_21 = arith.constant 0.000000e+00 : f32
      %49 = vector.broadcast %cst_21 : f32 to vector<1x128xf32>
      %50 = arith.subf %49, %48 : vector<1x128xf32>
      %51 = math.exp %50 : vector<1x128xf32>
      %52 = math.log1p %51 : vector<1x128xf32>
      %53 = arith.addf %46, %52 : vector<1x128xf32>
      %cst_22 = arith.constant 0xFF800000 : f32
      %54 = vector.broadcast %cst_22 : f32 to vector<1x128xf32>
      %55 = arith.cmpf oeq, %46, %54 : vector<1x128xf32>
      %56 = arith.select %55, %46, %53 : vector<1x128xi1>, vector<1x128xf32>
      %c3_23 = arith.constant 3 : index
      %c0_24 = arith.constant 0 : index
      %57 = vector.load %arg7[%c3_23, %c0_24] : memref<5x128xf32, #tpu.memory_space<vmem>>, vector<1x128xf32>
      tpu.vector_store %arg7[%c3_23, %c0_24], %56 {strides = array<i32>} : memref<5x128xf32, #tpu.memory_space<vmem>>, vector<1x128xf32>,
      %c4 = arith.constant 4 : index
      %c0_25 = arith.constant 0 : index
      %58 = vector.load %arg7[%c4, %c0_25] : memref<5x128xf32, #tpu.memory_space<vmem>>, vector<1x128xf32>
      %59 = vector.extract_strided_slice %11 {offsets = [3, 0], sizes = [1, 128], strides = [1, 1]} : vector<4x128xf32> to vector<1x128xf32>
      %60 = arith.addf %56, %59 : vector<1x128xf32>
      %61 = arith.maximumf %58, %60 : vector<1x128xf32>
      %62 = arith.subf %58, %60 : vector<1x128xf32>
      %63 = math.absf %62 : vector<1x128xf32>
      %cst_26 = arith.constant 0.000000e+00 : f32
      %64 = vector.broadcast %cst_26 : f32 to vector<1x128xf32>
      %65 = arith.subf %64, %63 : vector<1x128xf32>
      %66 = math.exp %65 : vector<1x128xf32>
      %67 = math.log1p %66 : vector<1x128xf32>
      %68 = arith.addf %61, %67 : vector<1x128xf32>
      %cst_27 = arith.constant 0xFF800000 : f32
      %69 = vector.broadcast %cst_27 : f32 to vector<1x128xf32>
      %70 = arith.cmpf oeq, %61, %69 : vector<1x128xf32>
      %71 = arith.select %70, %61, %68 : vector<1x128xi1>, vector<1x128xf32>
      %c4_28 = arith.constant 4 : index
      %c0_29 = arith.constant 0 : index
      %72 = vector.load %arg7[%c4_28, %c0_29] : memref<5x128xf32, #tpu.memory_space<vmem>>, vector<1x128xf32>
      tpu.vector_store %arg7[%c4_28, %c0_29], %71 {strides = array<i32>} : memref<5x128xf32, #tpu.memory_space<vmem>>, vector<1x128xf32>,
      %c0_30 = arith.constant 0 : index
      %c0_31 = arith.constant 0 : index
      %73 = vector.load %arg7[%c0_30, %c0_31] : memref<5x128xf32, #tpu.memory_space<vmem>>, vector<5x128xf32>
      %74 = arith.index_cast %arg8 : i32 to index
      %c0_32 = arith.constant 0 : index
      %c0_33 = arith.constant 0 : index
      %75 = vector.load %arg2[%74, %c0_32, %c0_33] : memref<8x5x128xf32, #tpu.memory_space<vmem>>, vector<1x5x128xf32>
      %76 = vector.shape_cast %75 : vector<1x5x128xf32> to vector<5x128xf32>
      %77 = arith.addf %73, %76 : vector<5x128xf32>
      %c0_34 = arith.constant 0 : index
      %c0_35 = arith.constant 0 : index
      %78 = vector.load %arg7[%c0_34, %c0_35] : memref<5x128xf32, #tpu.memory_space<vmem>>, vector<5x128xf32>
      tpu.vector_store %arg7[%c0_34, %c0_35], %77 {strides = array<i32>} : memref<5x128xf32, #tpu.memory_space<vmem>>, vector<5x128xf32>,
      %79 = vector.broadcast %2 : vector<1x128xi32> to vector<5x128xi32>
      %80 = arith.cmpi eq, %0, %79 : vector<5x128xi32>
      %81 = vector.broadcast %8 : i32 to vector<1x128xi32>
      %82 = arith.cmpi eq, %81, %1 : vector<1x128xi32>
      %83 = vector.broadcast %82 : vector<1x128xi1> to vector<5x128xi1>
      %84 = arith.andi %80, %83 : vector<5x128xi1>
      %c0_36 = arith.constant 0 : index
      %c0_37 = arith.constant 0 : index
      %85 = vector.load %arg6[%c0_36, %c0_37] : memref<1x128xf32, #tpu.memory_space<vmem>>, vector<1x128xf32>
      %c0_38 = arith.constant 0 : index
      %c0_39 = arith.constant 0 : index
      %86 = vector.load %arg7[%c0_38, %c0_39] : memref<5x128xf32, #tpu.memory_space<vmem>>, vector<5x128xf32>
      %cst_40 = arith.constant 0.000000e+00 : f32
      %87 = vector.broadcast %cst_40 : f32 to vector<5x128xf32>
      %88 = arith.select %84, %86, %87 : vector<5x128xi1>, vector<5x128xf32>
      %cst_41 = arith.constant dense<0.000000e+00> : vector<128xf32>
      %89 = vector.multi_reduction <add>, %88, %cst_41 [0] : vector<5x128xf32> to vector<128xf32>
      %90 = vector.shape_cast %89 : vector<128xf32> to vector<1x128xf32>
      %91 = arith.subf %85, %90 : vector<1x128xf32>
      %c0_42 = arith.constant 0 : index
      %c0_43 = arith.constant 0 : index
      %92 = vector.load %arg6[%c0_42, %c0_43] : memref<1x128xf32, #tpu.memory_space<vmem>>, vector<1x128xf32>
      tpu.vector_store %arg6[%c0_42, %c0_43], %91 {strides = array<i32>} : memref<1x128xf32, #tpu.memory_space<vmem>>, vector<1x128xf32>,
    }
    %c8_i32_5 = arith.constant 8 : i32
    return
  }
  func.func @transform_0(%arg0: i32, %arg1: i32) -> (i32, i32, i32) {
    %c0_i32 = arith.constant 0 : i32
    %c0_i32_0 = arith.constant 0 : i32
    return %arg1, %c0_i32, %arg0 : i32, i32, i32
  }
  func.func @transform_1(%arg0: i32, %arg1: i32) -> (i32, i32, i32) {
    %c0_i32 = arith.constant 0 : i32
    %c0_i32_0 = arith.constant 0 : i32
    return %arg1, %c0_i32, %arg0 : i32, i32, i32
  }
  func.func @transform_2(%arg0: i32, %arg1: i32) -> (i32, i32) {
    %c0_i32 = arith.constant 0 : i32
    %c0_i32_0 = arith.constant 0 : i32
    return %c0_i32, %arg0 : i32, i32
  }
  func.func @transform_3(%arg0: i32, %arg1: i32) -> (i32, i32) {
    %c0_i32 = arith.constant 0 : i32
    %c0_i32_0 = arith.constant 0 : i32
    return %c0_i32, %arg0 : i32, i32
  }
  func.func @transform_4(%arg0: i32, %arg1: i32) -> (i32, i32) {
    %c0_i32 = arith.constant 0 : i32
    %c0_i32_0 = arith.constant 0 : i32
    return %c0_i32, %arg0 : i32, i32
  }
}

</mosaic_0001>

<llo_original>
// kernel: tpu_custom_call.1
$region0: #{tpu_custom_call.1}
  #allocation0 [shape = 'u32[]', space=smem, size = 0x4, offset = 0x4, fixed_abs, tag = 'smem constant byte address 0x4 - core index']
  #allocation1 [shape = 'u32[72,128]{1,0:T(1,128)}', space=vmem, size = 0x9000, scoped, tag = 'internal scratch']
  #allocation2 [shape = 'f32[5,128]{1,0:T(8,128)}', space=vmem, size = 0x1000, scoped, tag = 'scratch operand']
  %s0 = inlined_call_operand.vmem [shape: f32[8,5,128], index: 0, kind: input, shape index: {}]
  %s1 = inlined_call_operand.vmem [shape: f32[8,4,128], index: 1, kind: input, shape index: {}]
  %s2 = inlined_call_operand.vmem [shape: s32[1,128], index: 2, kind: input, shape index: {}]
  %s3 = inlined_call_operand.vmem [shape: s32[1,128], index: 3, kind: input, shape index: {}]
  %s4 = inlined_call_operand.hbm [shape: f32[1,128], index: 4, kind: output, shape index: {}]
  %s5 = sld [smem:[#allocation0]]
  $region37: #{tpu_custom_call.1} parent=0
    _
  %s7 = ssub.s32 1, %s5
  %s8 = scalar_select 0, %s7, %s5
  $region1: #{tpu_custom_call.1} parent=0
    #allocation3 [shape = 'u8[512]{0}', space=vmem, size = 0x400, scoped, tag = 'output window, operand 0, single buffered']
    #allocation4 [shape = 's32[1]{0}', space=sflag, size = 0x4, scoped, tag = 'scoped memory for tpu_custom_call.1']
    %9 = vsyncpa [#allocation4], 0
    // Predicated region
    $region2: #{tpu_custom_call.1} parent=1 // pred_check
      _
    $region3: #{tpu_custom_call.1} parent=1 // pred_check_branch
      %11 = sbr.rel (0) target = $region5
    $region4: #{tpu_custom_call.1} parent=1 // pred_region
      _
    $region5: #{tpu_custom_call.1} parent=1 // pred_fallthru
      _
    // Predicated region
    $region6: #{tpu_custom_call.1} parent=1 // pred_check
      _
    $region7: #{tpu_custom_call.1} parent=1 // pred_check_branch
      %13 = sbr.rel (0) target = $region9
    $region8: #{tpu_custom_call.1} parent=1 // pred_region
      _
    $region9: #{tpu_custom_call.1} parent=1 // pred_fallthru
      _
    // Predicated region
    $region10: #{tpu_custom_call.1} parent=1 // pred_check
      _
    $region11: #{tpu_custom_call.1} parent=1 // pred_check_branch
      %15 = sbr.rel (0) target = $region13
    $region12: #{tpu_custom_call.1} parent=1 // pred_region
      _
    $region13: #{tpu_custom_call.1} parent=1 // pred_fallthru
      _
    // Predicated region
    $region14: #{tpu_custom_call.1} parent=1 // pred_check
      _
    $region15: #{tpu_custom_call.1} parent=1 // pred_check_branch
      %17 = sbr.rel (0) target = $region17
    $region16: #{tpu_custom_call.1} parent=1 // pred_region
      _
    $region17: #{tpu_custom_call.1} parent=1 // pred_fallthru
      _
    %v18 = vlaneseq
    %v19 = vshrl.u32 %v18, 7
    %v20 = vld [vmem:[%s2] sm:$0x1]
    %v21 = vld [vmem:[%s3] sm:$0x1]
    %p22 = scmp.eq.s32.totalorder 0, 0
    // Predicated region
    $region18: #{tpu_custom_call.1} parent=1 // pred_check
      %p23 = pneg %p22
    $region19: #{tpu_custom_call.1} parent=1 // pred_check_branch
      %25 = sbr.rel (%p23) target = $region21
    $region20: #{tpu_custom_call.1} parent=1 // pred_region
      %26 = vst [vmem:[#allocation3] sm:$0x1] 0.0
      %vm27 = vcmp.eq.s32.totalorder %v19, 0
      %v28 = vsel %vm27, 0.0, -1e+30
      %29 = vst [vmem:[#allocation2] sm:$0x1f] %v28
    $region21: #{tpu_custom_call.1} parent=1 // pred_fallthru
      _
    loop: start=0, step=1, limit=8
    $region22: #{tpu_custom_call.1} parent=1 // loop_pre_header
      _
    $region23: #{tpu_custom_call.1} parent=1 // loop_header
      %s31 = sphi 0, %s35
      %p32 = scmp.ge.s32.totalorder %s31, 8
    $region24: #{tpu_custom_call.1} parent=1 // loop_header_branch
      %34 = sbr.rel (%p32) target = $region28
    $region25: #{tpu_custom_call.1} parent=1 // loop_body
      %s36 = smul.u32 0, 8
      %s37 = sadd.s32 %s36, %s31
      %s38 = smul.u32 %s31, 4
      %s39 = scalar_lea.vmem %s1, %s38
      %v40 = vld [vmem:[%s39] sm:$0xf]
      %v41 = vld [vmem:[#allocation2] sm:$0x1]
      %v42 = vld [vmem:[#allocation2 + $0x1] sm:$0x1]
      %v43 = vadd.f32 %v41, %v40
      %v44 = vmax.f32 %v42, %v43
      %v45 = vsub.f32 %v42, %v43
      %v46 = vand.u32 2147483647, %v45
      %v47 = vsub.f32 0.0, %v46
      %v48 = vmul.f32 %v47, 1.442695
      %v49 = vpow.pop %v48
      %v50 = vadd.f32 %v49, 1.0
      %v51 = vlog2.pop %v50
      %v52 = vmul.f32 %v51, 0.6931472
      %v53 = vmul.f32 -0.5, %v49
      %v54 = vadd.f32 %v53, 1.0
      %v55 = vmul.f32 %v54, %v49
      %v56 = vand.u32 2147483647, %v49
      %vm57 = vcmp.lt.f32.partialorder %v56, 0.0004427343
      %v58 = vsel %vm57, %v55, %v52
      %v59 = vadd.f32 %v44, %v58
      %vm60 = vcmp.eq.f32.partialorder %v44, -inf
      %v61 = vsel %vm60, %v44, %v59
      %62 = vst [vmem:[#allocation2 + $0x1] sm:$0x1] %v61
      %v63 = vld [vmem:[#allocation2 + $0x2] sm:$0x1]
      %v65 = vrot.slane %v40, 1
      %v67 = vadd.f32 %v61, %v65
      %v68 = vmax.f32 %v63, %v67
      %v69 = vsub.f32 %v63, %v67
      %v70 = vand.u32 2147483647, %v69
      %v71 = vsub.f32 0.0, %v70
      %v72 = vmul.f32 %v71, 1.442695
      %v73 = vpow.pop %v72
      %v74 = vadd.f32 %v73, 1.0
      %v75 = vlog2.pop %v74
      %v76 = vmul.f32 %v75, 0.6931472
      %v77 = vmul.f32 -0.5, %v73
      %v78 = vadd.f32 %v77, 1.0
      %v79 = vmul.f32 %v78, %v73
      %v80 = vand.u32 2147483647, %v73
      %vm81 = vcmp.lt.f32.partialorder %v80, 0.0004427343
      %v82 = vsel %vm81, %v79, %v76
      %v83 = vadd.f32 %v68, %v82
      %vm84 = vcmp.eq.f32.partialorder %v68, -inf
      %v85 = vsel %vm84, %v68, %v83
      %86 = vst [vmem:[#allocation2 + $0x2] sm:$0x1] %v85
      %v87 = vld [vmem:[#allocation2 + $0x3] sm:$0x1]
      %v88 = vrot.slane %v40, 2
      %v90 = vadd.f32 %v85, %v88
      %v91 = vmax.f32 %v87, %v90
      %v92 = vsub.f32 %v87, %v90
      %v93 = vand.u32 2147483647, %v92
      %v94 = vsub.f32 0.0, %v93
      %v95 = vmul.f32 %v94, 1.442695
      %v96 = vpow.pop %v95
      %v97 = vadd.f32 %v96, 1.0
      %v98 = vlog2.pop %v97
      %v99 = vmul.f32 %v98, 0.6931472
      %v100 = vmul.f32 -0.5, %v96
      %v101 = vadd.f32 %v100, 1.0
      %v102 = vmul.f32 %v101, %v96
      %v103 = vand.u32 2147483647, %v96
      %vm104 = vcmp.lt.f32.partialorder %v103, 0.0004427343
      %v105 = vsel %vm104, %v102, %v99
      %v106 = vadd.f32 %v91, %v105
      %vm107 = vcmp.eq.f32.partialorder %v91, -inf
      %v108 = vsel %vm107, %v91, %v106
      %109 = vst [vmem:[#allocation2 + $0x3] sm:$0x1] %v108
      %v110 = vld [vmem:[#allocation2 + $0x4] sm:$0x1]
      %v111 = vrot.slane %v40, 3
      %v113 = vadd.f32 %v108, %v111
      %v114 = vmax.f32 %v110, %v113
      %v115 = vsub.f32 %v110, %v113
      %v116 = vand.u32 2147483647, %v115
      %v117 = vsub.f32 0.0, %v116
      %v118 = vmul.f32 %v117, 1.442695
      %v119 = vpow.pop %v118
      %v120 = vadd.f32 %v119, 1.0
      %v121 = vlog2.pop %v120
      %v122 = vmul.f32 %v121, 0.6931472
      %v123 = vmul.f32 -0.5, %v119
      %v124 = vadd.f32 %v123, 1.0
      %v125 = vmul.f32 %v124, %v119
      %v126 = vand.u32 2147483647, %v119
      %vm127 = vcmp.lt.f32.partialorder %v126, 0.0004427343
      %v128 = vsel %vm127, %v125, %v122
      %v129 = vadd.f32 %v114, %v128
      %vm130 = vcmp.eq.f32.partialorder %v114, -inf
      %v131 = vsel %vm130, %v114, %v129
      %132 = vst [vmem:[#allocation2 + $0x4] sm:$0x1] %v131
      %v133 = vld [vmem:[#allocation2] sm:$0x1f]
      %s134 = smul.u32 %s31, 8
      %s135 = scalar_lea.vmem %s0, %s134
      %v136 = vld [vmem:[%s135] sm:$0x1f]
      %v137 = vadd.f32 %v133, %v136
      %138 = vst [vmem:[#allocation2] sm:$0x1f] %v137
      %v139 = vperm.slane %v21, 0
      %vm140 = vcmp.eq.s32.totalorder %v19, %v139
      %v141 = vstv %s37
      %vm142 = vcmp.eq.s32.totalorder %v141, %v20
      %v143 = vsel %vm142, 1, 0
      %v144 = vperm.slane %v143, 0
      %vm145 = vcmp.eq.s32.totalorder %v144, 1
      %vm146 = vmand %vm140, %vm145
      %v147 = vld [vmem:[#allocation3] sm:$0x1]
      %v148 = vld [vmem:[#allocation2] sm:$0x1f]
      %v149 = vsel %vm146, %v148, 0.0
      %vm150 = vcmask 1044480
      %v151 = vsel %vm150, %v149, 0.0
      %v152 = vrot.slane %v151, 4
      %v153 = vadd.f32 %v151, %v152
      %v154 = vrot.slane %v153, 2
      %v155 = vadd.f32 %v153, %v154
      %v156 = vrot.slane %v155, 1
      %v157 = vadd.f32 %v155, %v156
      %v158 = vsub.f32 %v147, %v157
      %159 = vst [vmem:[#allocation3] sm:$0x1] %v158
    $region26: #{tpu_custom_call.1} parent=1 // loop_footer
      %s35 = sadd.s32 1, %s31
    $region27: #{tpu_custom_call.1} parent=1 // loop_footer_branch
      %30 = sbr.rel target = $region23
    $region28: #{tpu_custom_call.1} parent=1 // loop_exit
      _
    // Predicated region
    $region29: #{tpu_custom_call.1} parent=1 // pred_check
      _
    $region30: #{tpu_custom_call.1} parent=1 // pred_check_branch
      %161 = sbr.rel (0) target = $region32
    $region31: #{tpu_custom_call.1} parent=1 // pred_region
      %163 = vsyncadd [#allocation4], 0
      %s165 = sshll.u32 [#allocation3], 4
      %s166 = int_to_ptr.vmem [resolvable:$true] %s165
      %s167 = sshll.u32 %s4, 4
      %s168 = int_to_ptr.hbm [resolvable:$true] %s167
      %170 = dma.vmem_to_hbm [thread:$0]  %s166, 16, %s168, [#allocation4]
    $region32: #{tpu_custom_call.1} parent=1 // pred_fallthru
      _
    // Predicated region
    $region33: #{tpu_custom_call.1} parent=1 // pred_check
      _
    $region34: #{tpu_custom_call.1} parent=1 // pred_check_branch
      %172 = sbr.rel (0) target = $region36
    $region35: #{tpu_custom_call.1} parent=1 // pred_region
      %174 = dma.done [#allocation4], 16
    $region36: #{tpu_custom_call.1} parent=1 // pred_fallthru
      _
    %175 = vsyncpa [#allocation4], 1

</llo_original>
